<compile_context>
chip_gen: v5e
topology: v5e:2x2
jax: 0.10.0
libtpu: 0.0.40
codegen_flags: <defaults>
</compile_context>

<pallas_src>
import functools

import jax
import jax.numpy as jnp
import numpy as np
from jax.experimental import pallas as pl
from jax.experimental.pallas import tpu as pltpu

BIG = 1.0e12       # matches 1000000000000.0 in the torch reference
LANES = 128


def _round_up(x, m):
    return ((x + m - 1) // m) * m


def _lse_with_zero(z):
    # logsumexp(concat([z, zeros], -1), axis=-1), numerically stable, keepdims.
    m = jnp.maximum(jnp.max(z, axis=-1, keepdims=True), 0.0)
    s = jnp.sum(jnp.exp(z - m), axis=-1, keepdims=True) + jnp.exp(-m)
    return m + jnp.log(s)


# ---------------------------------------------------------------------------
# Fused kernel: logits = x @ W + b ; per-row multilabel cross entropy
# ---------------------------------------------------------------------------
def _fused_kernel(x_ref, w_ref, b_ref, y_ref, logits_ref, loss_ref, *, real_c):
    # Linear head: f32 x cast to bf16 in-register (hidden under the x DMA); MXU acc in f32.
    logits = jnp.dot(x_ref[...].astype(jnp.bfloat16), w_ref[...],
                     preferred_element_type=jnp.float32) + b_ref[...]        # (tm, Cp)
    logits_ref[...] = logits                                                 # lane-dense vst

    # Multilabel cross entropy (https://kexue.fm/archives/7359) on the real classes only.
    lg = logits[:, :real_c]                                                  # (tm, C)
    y = y_ref[...]                                                           # (tm, C) 0/1 f32

    y_pred = (1.0 - 2.0 * y) * lg
    y_pred_neg = y_pred - y * BIG
    y_pred_pos = y_pred - (1.0 - y) * BIG

    # Per-row loss.  Rows beyond the real batch in a ragged last block are discarded by the
    # partial-block writeback; the mean over the real B happens in the wrapper.
    loss_ref[...] = _lse_with_zero(y_pred_neg) + _lse_with_zero(y_pred_pos)  # (tm, 1)


# ---------------------------------------------------------------------------
# Inference-only kernel (label is None): just the linear head.
# ---------------------------------------------------------------------------
def _logits_kernel(x_ref, w_ref, b_ref, out_ref):
    out_ref[...] = jnp.dot(x_ref[...].astype(jnp.bfloat16), w_ref[...],
                           preferred_element_type=jnp.float32) + b_ref[...]


# ---------------------------------------------------------------------------
# One-time parameter prep (hoisted out of the per-call forward)
# ---------------------------------------------------------------------------
def prepare_linear_params(w, b):
    """Cast nn.Linear(768, class_num) weights to bf16 and zero-pad the class axis to a
    lane-dense multiple of 128.  Call once; reuse across forwards."""
    _, c = w.shape
    cp = _round_up(c, LANES)
    w_p = jnp.pad(w.astype(jnp.bfloat16), ((0, 0), (0, cp - c)))
    b_p = jnp.pad(jnp.reshape(b, (1, -1)).astype(jnp.float32), ((0, 0), (0, cp - c)))
    return w_p, b_p, c


# ---------------------------------------------------------------------------
# forward() equivalent of CaseClassification (minus the checkpointed BERT body)
# ---------------------------------------------------------------------------
def case_classification_forward(pooler_output, w_p, b_p, class_num, label=None, *,
                                block_b=1024):
    B, H = pooler_output.shape
    Cp = w_p.shape[1]
    C = class_num

    tm = min(block_b, _round_up(B, 8))       # batch tile, multiple of 8 sublanes
    n_steps = pl.cdiv(B, tm)                 # ragged last block instead of padding B

    x_spec = pl.BlockSpec((tm, H), lambda i: (i, 0))
    w_spec = pl.BlockSpec((H, Cp), lambda i: (0, 0))     # constant index -> VMEM-resident
    b_spec = pl.BlockSpec((1, Cp), lambda i: (0, 0))
    logits_spec = pl.BlockSpec((tm, Cp), lambda i: (i, 0))

    if label is None:
        logits_p = pl.pallas_call(
            _logits_kernel,
            out_shape=jax.ShapeDtypeStruct((B, Cp), jnp.float32),
            grid=(n_steps,),
            in_specs=[x_spec, w_spec, b_spec],
            out_specs=logits_spec,
            compiler_params=pltpu.CompilerParams(dimension_semantics=("parallel",)),
        )(pooler_output, w_p, b_p)
        return logits_p[:, :C]

    y = label.astype(jnp.float32)            # (B, C); 0/1 labels, no padding pass
    kernel = functools.partial(_fused_kernel, real_c=C)
    logits_p, per_row = pl.pallas_call(
        kernel,
        out_shape=(jax.ShapeDtypeStruct((B, Cp), jnp.float32),
                   jax.ShapeDtypeStruct((B, 1), jnp.float32)),
        grid=(n_steps,),
        in_specs=[x_spec, w_spec, b_spec,
                  pl.BlockSpec((tm, C), lambda i: (i, 0))],   # C == full class dim -> legal
        out_specs=(logits_spec, pl.BlockSpec((tm, 1), lambda i: (i, 0))),
        # Per-block/per-row partial losses -> no revisited accumulator -> "parallel" grid axis
        # (v7x can shard the batch tiles across its two TensorCores).
        compiler_params=pltpu.CompilerParams(dimension_semantics=("parallel",)),
    )(pooler_output, w_p, b_p, y)
    loss = jnp.sum(per_row) / B              # mean over the real batch
    return loss, logits_p[:, :C]


# ---------------------------------------------------------------------------
# pure-JAX reference (same bf16 matmul operands as the kernel) for a sanity check
# ---------------------------------------------------------------------------
def _ref_forward(pooler, w, b, label):
    logits = jnp.dot(pooler.astype(jnp.bfloat16), w.astype(jnp.bfloat16),
                     preferred_element_type=jnp.float32) + jnp.reshape(b, (1, -1))
    y_pred = (1.0 - 2.0 * label) * logits
    y_pred_neg = y_pred - label * BIG
    y_pred_pos = y_pred - (1.0 - label) * BIG
    zeros = jnp.zeros_like(y_pred[..., :1])
    neg = jax.scipy.special.logsumexp(jnp.concatenate([y_pred_neg, zeros], -1), axis=-1)
    pos = jax.scipy.special.logsumexp(jnp.concatenate([y_pred_pos, zeros], -1), axis=-1)
    return jnp.mean(neg + pos), logits


if __name__ == "__main__":
    B, H, C = 8, 768, 16   # batch, BERT hidden size, class_num

    key = jax.random.PRNGKey(0)
    k_pool, k_w, k_b, k_lab = jax.random.split(key, 4)

    pooler = jax.random.normal(k_pool, (B, H), dtype=jnp.float32)
    w = jax.random.normal(k_w, (H, C), dtype=jnp.float32) * 0.02   # torch Linear weight, transposed
    b = jax.random.normal(k_b, (C,), dtype=jnp.float32) * 0.02
    label = jax.random.bernoulli(k_lab, 0.3, (B, C)).astype(jnp.float32)

    # One-time head prep (hoisted out of the per-step forward).
    w_p, b_p, class_num = prepare_linear_params(w, b)

    loss, logits = case_classification_forward(pooler, w_p, b_p, class_num, label=label)
    jax.block_until_ready((loss, logits))

    logits_only = case_classification_forward(pooler, w_p, b_p, class_num)
    jax.block_until_ready(logits_only)

    ref_loss, ref_logits = _ref_forward(pooler, w, b, label)
    np.testing.assert_allclose(np.asarray(logits), np.asarray(ref_logits), rtol=5e-3, atol=5e-3)
    np.testing.assert_allclose(np.asarray(logits_only), np.asarray(ref_logits), rtol=5e-3, atol=5e-3)
    np.testing.assert_allclose(float(loss), float(ref_loss), rtol=5e-3, atol=5e-3)

    print("KERNEL_OK")
</pallas_src>

<mosaic_0001>
module attributes {stable_mosaic.version = 11 : i64} {
  func.func @_fused_kernel(%arg0: i32, %arg1: memref<8x768xf32, #tpu.memory_space<vmem>>, %arg2: memref<768x128xbf16, #tpu.memory_space<vmem>>, %arg3: memref<1x128xf32, #tpu.memory_space<vmem>>, %arg4: memref<8x16xf32, #tpu.memory_space<vmem>>, %arg5: memref<8x128xf32, #tpu.memory_space<vmem>>, %arg6: memref<8x1xf32, #tpu.memory_space<vmem>>) attributes {dimension_semantics = [#tpu.dimension_semantics<parallel>], iteration_bounds = array<i64: 1>, scalar_prefetch = 0 : i64, scratch_operands = 0 : i64, tpu.core_type = #tpu.core_type<tc>, window_params = [{transform_indices = @transform_0, window_bounds = array<i64: 8, 768>}, {pipeline_mode = #tpu.pipeline_mode<synchronous>, transform_indices = @transform_1, window_bounds = array<i64: 768, 128>}, {pipeline_mode = #tpu.pipeline_mode<synchronous>, transform_indices = @transform_2, window_bounds = array<i64: 1, 128>}, {transform_indices = @transform_3, window_bounds = array<i64: 8, 16>}, {transform_indices = @transform_4, window_bounds = array<i64: 8, 128>}, {transform_indices = @transform_5, window_bounds = array<i64: 8, 1>}]} {
    %c0 = arith.constant 0 : index
    %c0_0 = arith.constant 0 : index
    %0 = vector.load %arg1[%c0, %c0_0] : memref<8x768xf32, #tpu.memory_space<vmem>>, vector<8x768xf32>
    %1 = arith.truncf %0 : vector<8x768xf32> to vector<8x768xbf16>
    %c0_1 = arith.constant 0 : index
    %c0_2 = arith.constant 0 : index
    %2 = vector.load %arg2[%c0_1, %c0_2] : memref<768x128xbf16, #tpu.memory_space<vmem>>, vector<768x128xbf16>
    %cst = arith.constant dense<0.000000e+00> : vector<8x128xf32>
    %3 = tpu.matmul %1, %2, %cst {dimension_numbers = #tpu.dot_dimension_numbers<[1], [0], [0], [1], [0, 0, 1, 1], [], []>} : vector<8x768xbf16>, vector<768x128xbf16>, vector<8x128xf32> -> vector<8x128xf32>
    %c0_3 = arith.constant 0 : index
    %c0_4 = arith.constant 0 : index
    %4 = vector.load %arg3[%c0_3, %c0_4] : memref<1x128xf32, #tpu.memory_space<vmem>>, vector<1x128xf32>
    %5 = vector.broadcast %4 : vector<1x128xf32> to vector<8x128xf32>
    %6 = arith.addf %3, %5 : vector<8x128xf32>
    %c0_5 = arith.constant 0 : index
    %c0_6 = arith.constant 0 : index
    %7 = vector.load %arg5[%c0_5, %c0_6] : memref<8x128xf32, #tpu.memory_space<vmem>>, vector<8x128xf32>
    tpu.vector_store %arg5[%c0_5, %c0_6], %6 {strides = array<i32>} : memref<8x128xf32, #tpu.memory_space<vmem>>, vector<8x128xf32>,
    %8 = vector.extract_strided_slice %6 {offsets = [0, 0], sizes = [8, 16], strides = [1, 1]} : vector<8x128xf32> to vector<8x16xf32>
    %c0_7 = arith.constant 0 : index
    %c0_8 = arith.constant 0 : index
    %9 = vector.load %arg4[%c0_7, %c0_8] : memref<8x16xf32, #tpu.memory_space<vmem>>, vector<8x16xf32>
    %cst_9 = arith.constant 2.000000e+00 : f32
    %10 = vector.broadcast %cst_9 : f32 to vector<8x16xf32>
    %11 = arith.mulf %10, %9 : vector<8x16xf32>
    %cst_10 = arith.constant 1.000000e+00 : f32
    %12 = vector.broadcast %cst_10 : f32 to vector<8x16xf32>
    %13 = arith.subf %12, %11 : vector<8x16xf32>
    %14 = arith.mulf %13, %8 : vector<8x16xf32>
    %cst_11 = arith.constant 9.99999995E+11 : f32
    %15 = vector.broadcast %cst_11 : f32 to vector<8x16xf32>
    %16 = arith.mulf %9, %15 : vector<8x16xf32>
    %17 = arith.subf %14, %16 : vector<8x16xf32>
    %cst_12 = arith.constant 1.000000e+00 : f32
    %18 = vector.broadcast %cst_12 : f32 to vector<8x16xf32>
    %19 = arith.subf %18, %9 : vector<8x16xf32>
    %cst_13 = arith.constant 9.99999995E+11 : f32
    %20 = vector.broadcast %cst_13 : f32 to vector<8x16xf32>
    %21 = arith.mulf %19, %20 : vector<8x16xf32>
    %22 = arith.subf %14, %21 : vector<8x16xf32>
    %cst_14 = arith.constant dense<0xFF800000> : vector<8xf32>
    %23 = vector.multi_reduction <maximumf>, %17, %cst_14 [1] : vector<8x16xf32> to vector<8xf32>
    %24 = vector.shape_cast %23 : vector<8xf32> to vector<8x1xf32>
    %cst_15 = arith.constant 0.000000e+00 : f32
    %25 = vector.broadcast %cst_15 : f32 to vector<8x1xf32>
    %26 = arith.maximumf %24, %25 : vector<8x1xf32>
    %27 = vector.broadcast %26 : vector<8x1xf32> to vector<8x16xf32>
    %28 = arith.subf %17, %27 : vector<8x16xf32>
    %29 = math.exp %28 : vector<8x16xf32>
    %cst_16 = arith.constant dense<0.000000e+00> : vector<8xf32>
    %30 = vector.multi_reduction <add>, %29, %cst_16 [1] : vector<8x16xf32> to vector<8xf32>
    %31 = vector.shape_cast %30 : vector<8xf32> to vector<8x1xf32>
    %cst_17 = arith.constant 0.000000e+00 : f32
    %32 = vector.broadcast %cst_17 : f32 to vector<8x1xf32>
    %33 = arith.subf %32, %26 : vector<8x1xf32>
    %34 = math.exp %33 : vector<8x1xf32>
    %35 = arith.addf %31, %34 : vector<8x1xf32>
    %36 = math.log %35 : vector<8x1xf32>
    %37 = arith.addf %26, %36 : vector<8x1xf32>
    %cst_18 = arith.constant dense<0xFF800000> : vector<8xf32>
    %38 = vector.multi_reduction <maximumf>, %22, %cst_18 [1] : vector<8x16xf32> to vector<8xf32>
    %39 = vector.shape_cast %38 : vector<8xf32> to vector<8x1xf32>
    %cst_19 = arith.constant 0.000000e+00 : f32
    %40 = vector.broadcast %cst_19 : f32 to vector<8x1xf32>
    %41 = arith.maximumf %39, %40 : vector<8x1xf32>
    %42 = vector.broadcast %41 : vector<8x1xf32> to vector<8x16xf32>
    %43 = arith.subf %22, %42 : vector<8x16xf32>
    %44 = math.exp %43 : vector<8x16xf32>
    %cst_20 = arith.constant dense<0.000000e+00> : vector<8xf32>
    %45 = vector.multi_reduction <add>, %44, %cst_20 [1] : vector<8x16xf32> to vector<8xf32>
    %46 = vector.shape_cast %45 : vector<8xf32> to vector<8x1xf32>
    %cst_21 = arith.constant 0.000000e+00 : f32
    %47 = vector.broadcast %cst_21 : f32 to vector<8x1xf32>
    %48 = arith.subf %47, %41 : vector<8x1xf32>
    %49 = math.exp %48 : vector<8x1xf32>
    %50 = arith.addf %46, %49 : vector<8x1xf32>
    %51 = math.log %50 : vector<8x1xf32>
    %52 = arith.addf %41, %51 : vector<8x1xf32>
    %53 = arith.addf %37, %52 : vector<8x1xf32>
    %c0_22 = arith.constant 0 : index
    %c0_23 = arith.constant 0 : index
    %54 = vector.load %arg6[%c0_22, %c0_23] : memref<8x1xf32, #tpu.memory_space<vmem>>, vector<8x1xf32>
    tpu.vector_store %arg6[%c0_22, %c0_23], %53 {strides = array<i32>} : memref<8x1xf32, #tpu.memory_space<vmem>>, vector<8x1xf32>,
    return
  }
  func.func @transform_0(%arg0: i32) -> (i32, i32) {
    %c0_i32 = arith.constant 0 : i32
    %c0_i32_0 = arith.constant 0 : i32
    return %arg0, %c0_i32 : i32, i32
  }
  func.func @transform_1(%arg0: i32) -> (i32, i32) {
    %c0_i32 = arith.constant 0 : i32
    %c0_i32_0 = arith.constant 0 : i32
    %c0_i32_1 = arith.constant 0 : i32
    return %c0_i32, %c0_i32_0 : i32, i32
  }
  func.func @transform_2(%arg0: i32) -> (i32, i32) {
    %c0_i32 = arith.constant 0 : i32
    %c0_i32_0 = arith.constant 0 : i32
    %c0_i32_1 = arith.constant 0 : i32
    return %c0_i32, %c0_i32_0 : i32, i32
  }
  func.func @transform_3(%arg0: i32) -> (i32, i32) {
    %c0_i32 = arith.constant 0 : i32
    %c0_i32_0 = arith.constant 0 : i32
    return %arg0, %c0_i32 : i32, i32
  }
  func.func @transform_4(%arg0: i32) -> (i32, i32) {
    %c0_i32 = arith.constant 0 : i32
    %c0_i32_0 = arith.constant 0 : i32
    return %arg0, %c0_i32 : i32, i32
  }
  func.func @transform_5(%arg0: i32) -> (i32, i32) {
    %c0_i32 = arith.constant 0 : i32
    %c0_i32_0 = arith.constant 0 : i32
    return %arg0, %c0_i32 : i32, i32
  }
}

</mosaic_0001>

<llo_original>
// kernel: tpu_custom_call.1
$region0: #{tpu_custom_call.1}
  #allocation0 [shape = 'u32[]', space=smem, size = 0x4, offset = 0x4, fixed_abs, tag = 'smem constant byte address 0x4 - core index']
  #allocation1 [shape = 'u32[72,128]{1,0:T(1,128)}', space=vmem, size = 0x9000, scoped, tag = 'internal scratch']
  %s0 = inlined_call_operand.hbm [shape: f32[8,768], index: 0, kind: input, shape index: {}]
  %s1 = inlined_call_operand.hbm [shape: bf16[768,128], index: 1, kind: input, shape index: {}]
  %s2 = inlined_call_operand.vmem [shape: f32[1,128], index: 2, kind: input, shape index: {}]
  %s3 = inlined_call_operand.hbm [shape: f32[8,16], index: 3, kind: input, shape index: {}]
  %s4 = inlined_call_operand.hbm [shape: f32[8,128], index: 4, kind: output, shape index: {0}]
  %s5 = inlined_call_operand.vmem [shape: f32[8,1], index: 5, kind: output, shape index: {1}]
  %6 = xla_tuple %s4, %s5
  %s7 = sld [smem:[#allocation0]]
  $region46: #{tpu_custom_call.1} parent=0
    _
  %s9 = ssub.s32 1, %s7
  %s10 = scalar_select 0, %s9, %s7
  $region1: #{tpu_custom_call.1} parent=0
    #allocation2 [shape = 'u8[24576]{0}', space=vmem, size = 0x6000, scoped, tag = 'input window, operand 0, single buffered']
    #allocation3 [shape = 's32[1]{0}', space=sflag, size = 0x4, scoped, tag = 'scoped memory for tpu_custom_call.1']
    #allocation4 [shape = 's32[1]{0}', space=sflag, size = 0x4, scoped, tag = 'scoped memory for tpu_custom_call.1']
    #allocation5 [shape = 'u8[196608]{0}', space=vmem, size = 0x30000, scoped, tag = 'input window, operand 1, single buffered']
    #allocation6 [shape = 's32[1]{0}', space=sflag, size = 0x4, scoped, tag = 'scoped memory for tpu_custom_call.1']
    #allocation7 [shape = 'u8[4096]{0}', space=vmem, size = 0x1000, scoped, tag = 'input window, operand 3, single buffered']
    #allocation8 [shape = 'u8[4096]{0}', space=vmem, size = 0x1000, scoped, tag = 'output window, operand 0, single buffered']
    %11 = vsyncpa [#allocation3], 0
    %12 = vsyncpa [#allocation6], 0
    %13 = vsyncpa [#allocation4], 0
    // Predicated region
    $region2: #{tpu_custom_call.1} parent=1 // pred_check
      _
    $region3: #{tpu_custom_call.1} parent=1 // pred_check_branch
      %15 = sbr.rel (0) target = $region5
    $region4: #{tpu_custom_call.1} parent=1 // pred_region
      %17 = vsyncadd [#allocation3], 0
      %s19 = sshll.u32 %s0, 4
      %s20 = int_to_ptr.hbm [resolvable:$true] %s19
      %s21 = sshll.u32 [#allocation2], 4
      %s22 = int_to_ptr.vmem [resolvable:$true] %s21
      %24 = dma.hbm_to_vmem [thread:$0]  %s20, 768, %s22, [#allocation3]
    $region5: #{tpu_custom_call.1} parent=1 // pred_fallthru
      _
    // Predicated region
    $region6: #{tpu_custom_call.1} parent=1 // pred_check
      _
    $region7: #{tpu_custom_call.1} parent=1 // pred_check_branch
      %26 = sbr.rel (0) target = $region9
    $region8: #{tpu_custom_call.1} parent=1 // pred_region
      %28 = vsyncadd [#allocation6], 0
      %s29 = sshll.u32 %s1, 4
      %s30 = int_to_ptr.hbm [resolvable:$true] %s29
      %s31 = sshll.u32 [#allocation5], 4
      %s32 = int_to_ptr.vmem [resolvable:$true] %s31
      %37 = dma.hbm_to_vmem [thread:$0]  %s30, 6144, %s32, [#allocation6], 64, 64, 4
    $region9: #{tpu_custom_call.1} parent=1 // pred_fallthru
      _
    // Predicated region
    $region10: #{tpu_custom_call.1} parent=1 // pred_check
      _
    $region11: #{tpu_custom_call.1} parent=1 // pred_check_branch
      %39 = sbr.rel (0) target = $region13
    $region12: #{tpu_custom_call.1} parent=1 // pred_region
      _
    $region13: #{tpu_custom_call.1} parent=1 // pred_fallthru
      _
    // Predicated region
    $region14: #{tpu_custom_call.1} parent=1 // pred_check
      _
    $region15: #{tpu_custom_call.1} parent=1 // pred_check_branch
      %41 = sbr.rel (0) target = $region17
    $region16: #{tpu_custom_call.1} parent=1 // pred_region
      %43 = vsyncadd [#allocation6], 0
      %s45 = sshll.u32 %s3, 4
      %s46 = int_to_ptr.hbm [resolvable:$true] %s45
      %s47 = sshll.u32 [#allocation7], 4
      %s48 = int_to_ptr.vmem [resolvable:$true] %s47
      %50 = dma.hbm_to_vmem [thread:$0]  %s46, 128, %s48, [#allocation6]
    $region17: #{tpu_custom_call.1} parent=1 // pred_fallthru
      _
    // Predicated region
    $region18: #{tpu_custom_call.1} parent=1 // pred_check
      _
    $region19: #{tpu_custom_call.1} parent=1 // pred_check_branch
      %52 = sbr.rel (0) target = $region21
    $region20: #{tpu_custom_call.1} parent=1 // pred_region
      %54 = dma.done [#allocation3], 768
    $region21: #{tpu_custom_call.1} parent=1 // pred_fallthru
      _
    // Predicated region
    $region22: #{tpu_custom_call.1} parent=1 // pred_check
      _
    $region23: #{tpu_custom_call.1} parent=1 // pred_check_branch
      %56 = sbr.rel (0) target = $region25
    $region24: #{tpu_custom_call.1} parent=1 // pred_region
      %58 = dma.done [#allocation6], 6144
    $region25: #{tpu_custom_call.1} parent=1 // pred_fallthru
      _
    // Predicated region
    $region26: #{tpu_custom_call.1} parent=1 // pred_check
      _
    $region27: #{tpu_custom_call.1} parent=1 // pred_check_branch
      %60 = sbr.rel (0) target = $region29
    $region28: #{tpu_custom_call.1} parent=1 // pred_region
      %62 = dma.done [#allocation6], 128
    $region29: #{tpu_custom_call.1} parent=1 // pred_fallthru
      _
    %v63 = vld [vmem:[#allocation2] sm:$0xff]
    %v64 = vld [vmem:[#allocation2 + $0x8] sm:$0xff]
    %v65 = vld [vmem:[#allocation2 + $0x10] sm:$0xff]
    %v66 = vld [vmem:[#allocation2 + $0x18] sm:$0xff]
    %v67 = vld [vmem:[#allocation2 + $0x20] sm:$0xff]
    %v68 = vld [vmem:[#allocation2 + $0x28] sm:$0xff]
    %v69 = vpack.c.bf16 %v63, %v63
    %v70 = vpack.c.bf16 %v64, %v64
    %v71 = vpack.c.bf16 %v65, %v65
    %v72 = vpack.c.bf16 %v66, %v66
    %v73 = vpack.c.bf16 %v67, %v67
    %v74 = vpack.c.bf16 %v68, %v68
    %v75 = vld [vmem:[#allocation5] sm:$0xf]
    %v76 = vld [vmem:[#allocation5 + $0x4] sm:$0xf]
    %v77 = vld [vmem:[#allocation5 + $0x8] sm:$0xf]
    %v78 = vld [vmem:[#allocation5 + $0xc] sm:$0xf]
    %v79 = vld [vmem:[#allocation5 + $0x10] sm:$0xf]
    %v80 = vld [vmem:[#allocation5 + $0x14] sm:$0xf]
    %v81 = vld [vmem:[#allocation5 + $0x18] sm:$0xf]
    %v82 = vld [vmem:[#allocation5 + $0x1c] sm:$0xf]
    %v83 = vld [vmem:[#allocation5 + $0x20] sm:$0xf]
    %v84 = vld [vmem:[#allocation5 + $0x24] sm:$0xf]
    %v85 = vld [vmem:[#allocation5 + $0x28] sm:$0xf]
    %v86 = vld [vmem:[#allocation5 + $0x2c] sm:$0xf]
    %v87 = vld [vmem:[#allocation5 + $0x30] sm:$0xf]
    %v88 = vld [vmem:[#allocation5 + $0x34] sm:$0xf]
    %v89 = vld [vmem:[#allocation5 + $0x38] sm:$0xf]
    %v90 = vld [vmem:[#allocation5 + $0x3c] sm:$0xf]
    %v91 = vld [vmem:[#allocation5 + $0x40] sm:$0xf]
    %v92 = vld [vmem:[#allocation5 + $0x44] sm:$0xf]
    %v93 = vld [vmem:[#allocation5 + $0x48] sm:$0xf]
    %v94 = vld [vmem:[#allocation5 + $0x4c] sm:$0xf]
    %v95 = vld [vmem:[#allocation5 + $0x50] sm:$0xf]
    %v96 = vld [vmem:[#allocation5 + $0x54] sm:$0xf]
    %v97 = vld [vmem:[#allocation5 + $0x58] sm:$0xf]
    %v98 = vld [vmem:[#allocation5 + $0x5c] sm:$0xf]
    %v99 = vld [vmem:[#allocation5 + $0x60] sm:$0xf]
    %v100 = vld [vmem:[#allocation5 + $0x64] sm:$0xf]
    %v101 = vld [vmem:[#allocation5 + $0x68] sm:$0xf]
    %v102 = vld [vmem:[#allocation5 + $0x6c] sm:$0xf]
    %v103 = vld [vmem:[#allocation5 + $0x70] sm:$0xf]
    %v104 = vld [vmem:[#allocation5 + $0x74] sm:$0xf]
    %v105 = vld [vmem:[#allocation5 + $0x78] sm:$0xf]
    %v106 = vld [vmem:[#allocation5 + $0x7c] sm:$0xf]
    %v107 = vld [vmem:[#allocation5 + $0x80] sm:$0xf]
    %v108 = vld [vmem:[#allocation5 + $0x84] sm:$0xf]
    %v109 = vld [vmem:[#allocation5 + $0x88] sm:$0xf]
    %v110 = vld [vmem:[#allocation5 + $0x8c] sm:$0xf]
    %v111 = vld [vmem:[#allocation5 + $0x90] sm:$0xf]
    %v112 = vld [vmem:[#allocation5 + $0x94] sm:$0xf]
    %v113 = vld [vmem:[#allocation5 + $0x98] sm:$0xf]
    %v114 = vld [vmem:[#allocation5 + $0x9c] sm:$0xf]
    %v115 = vld [vmem:[#allocation5 + $0xa0] sm:$0xf]
    %v116 = vld [vmem:[#allocation5 + $0xa4] sm:$0xf]
    %v117 = vld [vmem:[#allocation5 + $0xa8] sm:$0xf]
    %v118 = vld [vmem:[#allocation5 + $0xac] sm:$0xf]
    %v119 = vld [vmem:[#allocation5 + $0xb0] sm:$0xf]
    %v120 = vld [vmem:[#allocation5 + $0xb4] sm:$0xf]
    %v121 = vld [vmem:[#allocation5 + $0xb8] sm:$0xf]
    %v122 = vld [vmem:[#allocation5 + $0xbc] sm:$0xf]
    %v123 = vld [vmem:[#allocation5 + $0xc0] sm:$0xf]
    %v124 = vld [vmem:[#allocation5 + $0xc4] sm:$0xf]
    %v125 = vld [vmem:[#allocation5 + $0xc8] sm:$0xf]
    %v126 = vld [vmem:[#allocation5 + $0xcc] sm:$0xf]
    %v127 = vld [vmem:[#allocation5 + $0xd0] sm:$0xf]
    %v128 = vld [vmem:[#allocation5 + $0xd4] sm:$0xf]
    %v129 = vld [vmem:[#allocation5 + $0xd8] sm:$0xf]
    %v130 = vld [vmem:[#allocation5 + $0xdc] sm:$0xf]
    %v131 = vld [vmem:[#allocation5 + $0xe0] sm:$0xf]
    %v132 = vld [vmem:[#allocation5 + $0xe4] sm:$0xf]
    %v133 = vld [vmem:[#allocation5 + $0xe8] sm:$0xf]
    %v134 = vld [vmem:[#allocation5 + $0xec] sm:$0xf]
    %v135 = vld [vmem:[#allocation5 + $0xf0] sm:$0xf]
    %v136 = vld [vmem:[#allocation5 + $0xf4] sm:$0xf]
    %v137 = vld [vmem:[#allocation5 + $0xf8] sm:$0xf]
    %v138 = vld [vmem:[#allocation5 + $0xfc] sm:$0xf]
    %v139 = vld [vmem:[#allocation5 + $0x100] sm:$0xf]
    %v140 = vld [vmem:[#allocation5 + $0x104] sm:$0xf]
    %v141 = vld [vmem:[#allocation5 + $0x108] sm:$0xf]
    %v142 = vld [vmem:[#allocation5 + $0x10c] sm:$0xf]
    %v143 = vld [vmem:[#allocation5 + $0x110] sm:$0xf]
    %v144 = vld [vmem:[#allocation5 + $0x114] sm:$0xf]
    %v145 = vld [vmem:[#allocation5 + $0x118] sm:$0xf]
    %v146 = vld [vmem:[#allocation5 + $0x11c] sm:$0xf]
    %v147 = vld [vmem:[#allocation5 + $0x120] sm:$0xf]
    %v148 = vld [vmem:[#allocation5 + $0x124] sm:$0xf]
    %v149 = vld [vmem:[#allocation5 + $0x128] sm:$0xf]
    %v150 = vld [vmem:[#allocation5 + $0x12c] sm:$0xf]
    %v151 = vld [vmem:[#allocation5 + $0x130] sm:$0xf]
    %v152 = vld [vmem:[#allocation5 + $0x134] sm:$0xf]
    %v153 = vld [vmem:[#allocation5 + $0x138] sm:$0xf]
    %v154 = vld [vmem:[#allocation5 + $0x13c] sm:$0xf]
    %v155 = vld [vmem:[#allocation5 + $0x140] sm:$0xf]
    %v156 = vld [vmem:[#allocation5 + $0x144] sm:$0xf]
    %v157 = vld [vmem:[#allocation5 + $0x148] sm:$0xf]
    %v158 = vld [vmem:[#allocation5 + $0x14c] sm:$0xf]
    %v159 = vld [vmem:[#allocation5 + $0x150] sm:$0xf]
    %v160 = vld [vmem:[#allocation5 + $0x154] sm:$0xf]
    %v161 = vld [vmem:[#allocation5 + $0x158] sm:$0xf]
    %v162 = vld [vmem:[#allocation5 + $0x15c] sm:$0xf]
    %v163 = vld [vmem:[#allocation5 + $0x160] sm:$0xf]
    %v164 = vld [vmem:[#allocation5 + $0x164] sm:$0xf]
    %v165 = vld [vmem:[#allocation5 + $0x168] sm:$0xf]
    %v166 = vld [vmem:[#allocation5 + $0x16c] sm:$0xf]
    %v167 = vld [vmem:[#allocation5 + $0x170] sm:$0xf]
    %v168 = vld [vmem:[#allocation5 + $0x174] sm:$0xf]
    %v169 = vld [vmem:[#allocation5 + $0x178] sm:$0xf]
    %v170 = vld [vmem:[#allocation5 + $0x17c] sm:$0xf]
    %v171 = vld [vmem:[%s2] sm:$0x1]
    %v173 = vperm.slane %v171, 0
    %v271 = vunpack.c.l.b16 %v75
    %v272 = vunpack.c.l.b16 %v76
    %v273 = vunpack.c.l.b16 %v77
    %v274 = vunpack.c.l.b16 %v78
    %v275 = vunpack.c.l.b16 %v79
    %v276 = vunpack.c.l.b16 %v80
    %v277 = vunpack.c.l.b16 %v81
    %v278 = vunpack.c.l.b16 %v82
    %v279 = vunpack.c.l.b16 %v83
    %v280 = vunpack.c.l.b16 %v84
    %v281 = vunpack.c.l.b16 %v85
    %v282 = vunpack.c.l.b16 %v86
    %v283 = vunpack.c.l.b16 %v87
    %v284 = vunpack.c.l.b16 %v88
    %v285 = vunpack.c.l.b16 %v89
    %v286 = vunpack.c.l.b16 %v90
    %v287 = vunpack.c.l.b16 %v91
    %v288 = vunpack.c.l.b16 %v92
    %v289 = vunpack.c.l.b16 %v93
    %v290 = vunpack.c.l.b16 %v94
    %v291 = vunpack.c.l.b16 %v95
    %v292 = vunpack.c.l.b16 %v96
    %v293 = vunpack.c.l.b16 %v97
    %v294 = vunpack.c.l.b16 %v98
    %v295 = vunpack.c.l.b16 %v99
    %v296 = vunpack.c.l.b16 %v100
    %v297 = vunpack.c.l.b16 %v101
    %v298 = vunpack.c.l.b16 %v102
    %v299 = vunpack.c.l.b16 %v103
    %v300 = vunpack.c.l.b16 %v104
    %v301 = vunpack.c.l.b16 %v105
    %v302 = vunpack.c.l.b16 %v106
    %v303 = vunpack.c.l.b16 %v107
    %v304 = vunpack.c.l.b16 %v108
    %v305 = vunpack.c.l.b16 %v109
    %v306 = vunpack.c.l.b16 %v110
    %v307 = vunpack.c.l.b16 %v111
    %v308 = vunpack.c.l.b16 %v112
    %v309 = vunpack.c.l.b16 %v113
    %v310 = vunpack.c.l.b16 %v114
    %v311 = vunpack.c.l.b16 %v115
    %v312 = vunpack.c.l.b16 %v116
    %v313 = vunpack.c.l.b16 %v117
    %v314 = vunpack.c.l.b16 %v118
    %v315 = vunpack.c.l.b16 %v119
    %v316 = vunpack.c.l.b16 %v120
    %v317 = vunpack.c.l.b16 %v121
    %v318 = vunpack.c.l.b16 %v122
    %v319 = vunpack.c.l.b16 %v123
    %v320 = vunpack.c.l.b16 %v124
    %v321 = vunpack.c.l.b16 %v125
    %v322 = vunpack.c.l.b16 %v126
    %v323 = vunpack.c.l.b16 %v127
    %v324 = vunpack.c.l.b16 %v128
    %v325 = vunpack.c.l.b16 %v129
    %v326 = vunpack.c.l.b16 %v130
    %v327 = vunpack.c.l.b16 %v131
    %v328 = vunpack.c.l.b16 %v132
    %v329 = vunpack.c.l.b16 %v133
    %v330 = vunpack.c.l.b16 %v134
    %v331 = vunpack.c.l.b16 %v135
    %v332 = vunpack.c.l.b16 %v136
    %v333 = vunpack.c.l.b16 %v137
    %v334 = vunpack.c.l.b16 %v138
    %v335 = vunpack.c.l.b16 %v139
    %v336 = vunpack.c.l.b16 %v140
    %v337 = vunpack.c.l.b16 %v141
    %v338 = vunpack.c.l.b16 %v142
    %v339 = vunpack.c.l.b16 %v143
    %v340 = vunpack.c.l.b16 %v144
    %v341 = vunpack.c.l.b16 %v145
    %v342 = vunpack.c.l.b16 %v146
    %v343 = vunpack.c.l.b16 %v147
    %v344 = vunpack.c.l.b16 %v148
    %v345 = vunpack.c.l.b16 %v149
    %v346 = vunpack.c.l.b16 %v150
    %v347 = vunpack.c.l.b16 %v151
    %v348 = vunpack.c.l.b16 %v152
    %v349 = vunpack.c.l.b16 %v153
    %v350 = vunpack.c.l.b16 %v154
    %v351 = vunpack.c.l.b16 %v155
    %v352 = vunpack.c.l.b16 %v156
    %v353 = vunpack.c.l.b16 %v157
    %v354 = vunpack.c.l.b16 %v158
    %v355 = vunpack.c.l.b16 %v159
    %v356 = vunpack.c.l.b16 %v160
    %v357 = vunpack.c.l.b16 %v161
    %v358 = vunpack.c.l.b16 %v162
    %v359 = vunpack.c.l.b16 %v163
    %v360 = vunpack.c.l.b16 %v164
    %v361 = vunpack.c.l.b16 %v165
    %v362 = vunpack.c.l.b16 %v166
    %v363 = vunpack.c.l.b16 %v167
    %v364 = vunpack.c.l.b16 %v168
    %v365 = vunpack.c.l.b16 %v169
    %v366 = vunpack.c.l.b16 %v170
    %v367 = vpack.c.b16 %v272, %v271
    %v368 = vpack.c.b16 %v274, %v273
    %v369 = vpack.c.b16 %v276, %v275
    %v370 = vpack.c.b16 %v278, %v277
    %v371 = vpack.c.b16 %v280, %v279
    %v372 = vpack.c.b16 %v282, %v281
    %v373 = vpack.c.b16 %v284, %v283
    %v374 = vpack.c.b16 %v286, %v285
    %v375 = vpack.c.b16 %v288, %v287
    %v376 = vpack.c.b16 %v290, %v289
    %v377 = vpack.c.b16 %v292, %v291
    %v378 = vpack.c.b16 %v294, %v293
    %v379 = vpack.c.b16 %v296, %v295
    %v380 = vpack.c.b16 %v298, %v297
    %v381 = vpack.c.b16 %v300, %v299
    %v382 = vpack.c.b16 %v302, %v301
    %v383 = vpack.c.b16 %v304, %v303
    %v384 = vpack.c.b16 %v306, %v305
    %v385 = vpack.c.b16 %v308, %v307
    %v386 = vpack.c.b16 %v310, %v309
    %v387 = vpack.c.b16 %v312, %v311
    %v388 = vpack.c.b16 %v314, %v313
    %v389 = vpack.c.b16 %v316, %v315
    %v390 = vpack.c.b16 %v318, %v317
    %v391 = vpack.c.b16 %v320, %v319
    %v392 = vpack.c.b16 %v322, %v321
    %v393 = vpack.c.b16 %v324, %v323
    %v394 = vpack.c.b16 %v326, %v325
    %v395 = vpack.c.b16 %v328, %v327
    %v396 = vpack.c.b16 %v330, %v329
    %v397 = vpack.c.b16 %v332, %v331
    %v398 = vpack.c.b16 %v334, %v333
    %v399 = vpack.c.b16 %v336, %v335
    %v400 = vpack.c.b16 %v338, %v337
    %v401 = vpack.c.b16 %v340, %v339
    %v402 = vpack.c.b16 %v342, %v341
    %v403 = vpack.c.b16 %v344, %v343
    %v404 = vpack.c.b16 %v346, %v345
    %v405 = vpack.c.b16 %v348, %v347
    %v406 = vpack.c.b16 %v350, %v349
    %v407 = vpack.c.b16 %v352, %v351
    %v408 = vpack.c.b16 %v354, %v353
    %v409 = vpack.c.b16 %v356, %v355
    %v410 = vpack.c.b16 %v358, %v357
    %v411 = vpack.c.b16 %v360, %v359
    %v412 = vpack.c.b16 %v362, %v361
    %v413 = vpack.c.b16 %v364, %v363
    %v414 = vpack.c.b16 %v366, %v365
    %463 = vmatpush.bf16.msra.mxu0 %v374
    %464 = vmatpush.bf16.msra.mxu0 %v373
    %465 = vmatpush.bf16.msra.mxu0 %v372
    %466 = vmatpush.bf16.msra.mxu0 %v371
    %467 = vmatpush.bf16.msra.mxu0 %v370
    %468 = vmatpush.bf16.msra.mxu0 %v369
    %469 = vmatpush.bf16.msra.mxu0 %v368
    %470 = vmatpush.bf16.msra.mxu0 %v367
    %471 = vmatmul.bf16.gmra.mxu0 %v69
    %v472 = vpop.f32.mrf.mxu0
    %v473 = vadd.f32 %v173, %v472
    %v474 = vpop.f32.mrf.mxu0
    %475 = vdwg.mxu0
    %476 = vmatpush.bf16.msra.mxu0 %v382
    %477 = vmatpush.bf16.msra.mxu0 %v381
    %478 = vmatpush.bf16.msra.mxu0 %v380
    %479 = vmatpush.bf16.msra.mxu0 %v379
    %480 = vmatpush.bf16.msra.mxu0 %v378
    %481 = vmatpush.bf16.msra.mxu0 %v377
    %482 = vmatpush.bf16.msra.mxu0 %v376
    %483 = vmatpush.bf16.msra.mxu0 %v375
    %484 = vmatmul.bf16.gmra.mxu0 %v70
    %v485 = vpop.f32.mrf.mxu0
    %v486 = vadd.f32 %v473, %v485
    %v487 = vpop.f32.mrf.mxu0
    %488 = vdwg.mxu0
    %489 = vmatpush.bf16.msra.mxu0 %v390
    %490 = vmatpush.bf16.msra.mxu0 %v389
    %491 = vmatpush.bf16.msra.mxu0 %v388
    %492 = vmatpush.bf16.msra.mxu0 %v387
    %493 = vmatpush.bf16.msra.mxu0 %v386
    %494 = vmatpush.bf16.msra.mxu0 %v385
    %495 = vmatpush.bf16.msra.mxu0 %v384
    %496 = vmatpush.bf16.msra.mxu0 %v383
    %497 = vmatmul.bf16.gmra.mxu0 %v71
    %v498 = vpop.f32.mrf.mxu0
    %v499 = vadd.f32 %v486, %v498
    %v500 = vpop.f32.mrf.mxu0
    %501 = vdwg.mxu0
    %502 = vmatpush.bf16.msra.mxu0 %v398
    %503 = vmatpush.bf16.msra.mxu0 %v397
    %504 = vmatpush.bf16.msra.mxu0 %v396
    %505 = vmatpush.bf16.msra.mxu0 %v395
    %506 = vmatpush.bf16.msra.mxu0 %v394
    %507 = vmatpush.bf16.msra.mxu0 %v393
    %508 = vmatpush.bf16.msra.mxu0 %v392
    %509 = vmatpush.bf16.msra.mxu0 %v391
    %510 = vmatmul.bf16.gmra.mxu0 %v72
    %v511 = vpop.f32.mrf.mxu0
    %v512 = vadd.f32 %v499, %v511
    %v513 = vpop.f32.mrf.mxu0
    %514 = vdwg.mxu0
    %515 = vmatpush.bf16.msra.mxu0 %v406
    %516 = vmatpush.bf16.msra.mxu0 %v405
    %517 = vmatpush.bf16.msra.mxu0 %v404
    %518 = vmatpush.bf16.msra.mxu0 %v403
    %519 = vmatpush.bf16.msra.mxu0 %v402
    %520 = vmatpush.bf16.msra.mxu0 %v401
    %521 = vmatpush.bf16.msra.mxu0 %v400
    %522 = vmatpush.bf16.msra.mxu0 %v399
    %523 = vmatmul.bf16.gmra.mxu0 %v73
    %v524 = vpop.f32.mrf.mxu0
    %v525 = vadd.f32 %v512, %v524
    %v526 = vpop.f32.mrf.mxu0
    %527 = vdwg.mxu0
    %528 = vmatpush.bf16.msra.mxu0 %v414
    %529 = vmatpush.bf16.msra.mxu0 %v413
    %530 = vmatpush.bf16.msra.mxu0 %v412
    %531 = vmatpush.bf16.msra.mxu0 %v411
    %532 = vmatpush.bf16.msra.mxu0 %v410
    %533 = vmatpush.bf16.msra.mxu0 %v409
    %534 = vmatpush.bf16.msra.mxu0 %v408
    %535 = vmatpush.bf16.msra.mxu0 %v407
    %536 = vmatmul.bf16.gmra.mxu0 %v74
    %v537 = vpop.f32.mrf.mxu0
    %v538 = vadd.f32 %v525, %v537
    %v539 = vpop.f32.mrf.mxu0
    %540 = vdwg.mxu0
    %541 = vst [vmem:[#allocation8] sm:$0xff] %v538
    %v542 = vld [vmem:[#allocation7] sm:$0xff]
    %v543 = vmul.f32 %v542, 2.0
    %v544 = vsub.f32 1.0, %v543
    %v545 = vmul.f32 %v544, %v538
    %v546 = vmul.f32 %v542, 1e+12
    %v547 = vsub.f32 %v545, %v546
    %v548 = vsub.f32 1.0, %v542
    %v549 = vmul.f32 %v548, 1e+12
    %v550 = vsub.f32 %v545, %v549
    %vm551 = vcmask 130048
    %v552 = vsel %vm551, %v547, -inf
    %553 = vmax.xlane.f32.xlu0 %v552
    %v554 = vpop.xlane.xlu0 %553
    %v555 = vmax.f32 %v554, 0.0
    %v556 = vsub.f32 %v547, %v555
    %v557 = vmul.f32 %v556, 1.442695
    %v558 = vpow.pop %v557
    %v559 = vsel %vm551, %v558, 0.0
    %560 = vadd.xlane.f32.xlu0 %v559
    %v561 = vpop.xlane.xlu0 %560
    %v562 = vsub.f32 0.0, %v555
    %v563 = vmul.f32 %v562, 1.442695
    %v564 = vpow.pop %v563
    %v565 = vadd.f32 %v561, %v564
    %v566 = vlog2.pop %v565
    %v567 = vmul.f32 %v566, 0.6931472
    %v568 = vadd.f32 %v555, %v567
    %v569 = vsel %vm551, %v550, -inf
    %570 = vmax.xlane.f32.xlu0 %v569
    %v571 = vpop.xlane.xlu0 %570
    %v572 = vmax.f32 %v571, 0.0
    %v573 = vsub.f32 %v550, %v572
    %v574 = vmul.f32 %v573, 1.442695
    %v575 = vpow.pop %v574
    %v576 = vsel %vm551, %v575, 0.0
    %577 = vadd.xlane.f32.xlu0 %v576
    %v578 = vpop.xlane.xlu0 %577
    %v579 = vsub.f32 0.0, %v572
    %v580 = vmul.f32 %v579, 1.442695
    %v581 = vpow.pop %v580
    %v582 = vadd.f32 %v578, %v581
    %v583 = vlog2.pop %v582
    %v584 = vmul.f32 %v583, 0.6931472
    %v585 = vadd.f32 %v572, %v584
    %v586 = vadd.f32 %v568, %v585
    %vm587 = vcmask 7168
    %588 = vst.msk [vmem:[%s5] sm:$0xff] %vm587, %v586
    // Predicated region
    $region30: #{tpu_custom_call.1} parent=1 // pred_check
      _
    $region31: #{tpu_custom_call.1} parent=1 // pred_check_branch
      %590 = sbr.rel (0) target = $region33
    $region32: #{tpu_custom_call.1} parent=1 // pred_region
      %592 = vsyncadd [#allocation4], 0
      %s594 = sshll.u32 [#allocation8], 4
      %s595 = int_to_ptr.vmem [resolvable:$true] %s594
      %s596 = sshll.u32 %s4, 4
      %s597 = int_to_ptr.hbm [resolvable:$true] %s596
      %599 = dma.vmem_to_hbm [thread:$0]  %s595, 128, %s597, [#allocation4]
    $region33: #{tpu_custom_call.1} parent=1 // pred_fallthru
      _
    // Predicated region
    $region34: #{tpu_custom_call.1} parent=1 // pred_check
      _
    $region35: #{tpu_custom_call.1} parent=1 // pred_check_branch
      %601 = sbr.rel (0) target = $region37
    $region36: #{tpu_custom_call.1} parent=1 // pred_region
      _
    $region37: #{tpu_custom_call.1} parent=1 // pred_fallthru
      _
    // Predicated region
    $region38: #{tpu_custom_call.1} parent=1 // pred_check
      _
    $region39: #{tpu_custom_call.1} parent=1 // pred_check_branch
      %603 = sbr.rel (0) target = $region41
    $region40: #{tpu_custom_call.1} parent=1 // pred_region
      %605 = dma.done [#allocation4], 128
    $region41: #{tpu_custom_call.1} parent=1 // pred_fallthru
      _
    // Predicated region
    $region42: #{tpu_custom_call.1} parent=1 // pred_check
      _
    $region43: #{tpu_custom_call.1} parent=1 // pred_check_branch
      %607 = sbr.rel (0) target = $region45
    $region44: #{tpu_custom_call.1} parent=1 // pred_region
      _
    $region45: #{tpu_custom_call.1} parent=1 // pred_fallthru
      _
    %608 = vsyncpa [#allocation3], 1
    %609 = vsyncpa [#allocation6], 1
    %610 = vsyncpa [#allocation4], 1

</llo_original>
